<compile_context>
chip_gen: v6e
topology: v6e:2x2x1
jax: 0.10.0
libtpu: 0.0.40
codegen_flags: <defaults>
</compile_context>

<pallas_src>
import jax
import jax.numpy as jnp
from jax import lax
from jax.experimental import pallas as pl
from jax.experimental.pallas import tpu as pltpu

LANES = 128
SUBLANES = 8
CHUNK = SUBLANES * LANES            # 1024 elements per (8, 128) chunk
MAX_CHUNK_BLOCK = 512               # 512 * 1024 * 4 B = 2 MiB per input tile


def _int_pow(x, e: int):
    """x ** e for a static integer e >= 1, as a short chain of multiplies."""
    acc = None
    base = x
    while e > 0:
        if e & 1:
            acc = base if acc is None else acc * base
        e >>= 1
        if e:
            base = base * base
    return acc


def _make_focal_sum_kernel(n_chunks: int, exponent: int, needs_mask: bool):
    def kernel(x_ref, y_ref, out_ref):
        p = pl.program_id(0)
        i = pl.program_id(1)
        steps = pl.num_programs(1)

        @pl.when(i == 0)
        def _():
            out_ref[...] = jnp.zeros_like(out_ref)

        d = x_ref[...].astype(jnp.float32) - y_ref[...].astype(jnp.float32)
        # |d| ** exponent ; abs is redundant for even exponents.
        base = d if exponent % 2 == 0 else jnp.abs(d)
        focal = _int_pow(base, exponent)

        if needs_mask:
            cb = x_ref.shape[0]
            chunk_ids = (p * steps + i) * cb + lax.broadcasted_iota(
                jnp.int32, x_ref.shape, 0)
            focal = jnp.where(chunk_ids < n_chunks, focal, 0.0)

        # Leading-axis sum -> (8, 128): pure VPU vreg adds, accumulated into
        # the resident (per-core) lane-dense output block.
        out_ref[...] += jnp.sum(focal, axis=0)

    return kernel


def focal_loss(inputs, targets, alpha=0.8, gamma: int = 2, c=0.2, smooth=1):
    # alpha, c, smooth are unused (matching the PyTorch forward); gamma sets
    # the static integer exponent 2 + gamma.
    assert inputs.shape == targets.shape
    exponent = int(2 + gamma)
    assert exponent >= 1
    n_elems = inputs.size
    assert n_elems > 0

    x = inputs.reshape(-1)
    y = targets.reshape(-1)
    pad = (-n_elems) % CHUNK
    if pad:
        # Rare misaligned case: pad only to the next 1024-element boundary.
        # Zeros contribute 0 to the sum; the mean divides by the true n_elems.
        x = jnp.pad(x, (0, pad))
        y = jnp.pad(y, (0, pad))
    n_chunks = x.size // CHUNK
    x3 = x.reshape(n_chunks, SUBLANES, LANES)   # free reshape (contiguous)
    y3 = y.reshape(n_chunks, SUBLANES, LANES)

    chunk_block = min(MAX_CHUNK_BLOCK, n_chunks)
    total_blocks = pl.cdiv(n_chunks, chunk_block)
    needs_mask = (n_chunks % chunk_block) != 0

    # Split the block axis across 2 TensorCores (v7x megacore) when it divides
    # evenly; on single-core chips the "parallel" axis just runs serially.
    p_split = 2 if (total_blocks >= 2 and total_blocks % 2 == 0) else 1
    steps = total_blocks // p_split

    kernel = _make_focal_sum_kernel(n_chunks, exponent, needs_mask)

    in_spec = pl.BlockSpec((chunk_block, SUBLANES, LANES),
                           lambda p, i: (p * steps + i, 0, 0))

    partial = pl.pallas_call(
        kernel,
        out_shape=jax.ShapeDtypeStruct((p_split * SUBLANES, LANES),
                                       jnp.float32),
        grid_spec=pltpu.PrefetchScalarGridSpec(
            num_scalar_prefetch=0,
            grid=(p_split, steps),
            in_specs=[in_spec, in_spec],
            out_specs=pl.BlockSpec((SUBLANES, LANES), lambda p, i: (p, 0)),
        ),
        compiler_params=pltpu.CompilerParams(
            dimension_semantics=("parallel", "arbitrary")),
    )(x3, y3)

    # Tiny final reduce (<= (16,128) elements) + mean in plain XLA.
    return jnp.sum(partial) / jnp.float32(n_elems)


if __name__ == "__main__":
    key = jax.random.PRNGKey(0)
    k1, k2 = jax.random.split(key)
    # NCHW like the PyTorch module: batch=2, channels=4, spatial=16x16.
    inputs = jax.random.uniform(k1, (2, 4, 16, 16), dtype=jnp.float32)
    targets = jax.random.uniform(k2, (2, 4, 16, 16), dtype=jnp.float32)

    out = focal_loss(inputs, targets)
    out = jax.block_until_ready(out)
    ref = jnp.mean(jnp.abs(inputs - targets) ** 4)
    assert jnp.allclose(out, ref, rtol=1e-5, atol=1e-6), (out, ref)

    # Also exercise the non-1024-aligned path (pads only to next 1024 boundary).
    k3, k4 = jax.random.split(k2)
    a = jax.random.uniform(k3, (2, 3, 15, 17), dtype=jnp.float32)
    b = jax.random.uniform(k4, (2, 3, 15, 17), dtype=jnp.float32)
    out2 = jax.block_until_ready(focal_loss(a, b))
    ref2 = jnp.mean(jnp.abs(a - b) ** 4)
    assert jnp.allclose(out2, ref2, rtol=1e-5, atol=1e-6), (out2, ref2)

    print("KERNEL_OK")
</pallas_src>

<mosaic_0001>
module attributes {stable_mosaic.version = 11 : i64} {
  func.func @kernel(%arg0: i32, %arg1: i32, %arg2: memref<2x8x128xf32, #tpu.memory_space<vmem>>, %arg3: memref<2x8x128xf32, #tpu.memory_space<vmem>>, %arg4: memref<8x128xf32, #tpu.memory_space<vmem>>) attributes {dimension_semantics = [#tpu.dimension_semantics<parallel>, #tpu.dimension_semantics<arbitrary>], iteration_bounds = array<i64: 1, 1>, scalar_prefetch = 0 : i64, scratch_operands = 0 : i64, tpu.core_type = #tpu.core_type<tc>, window_params = [{transform_indices = @transform_0, window_bounds = array<i64: 2, 8, 128>}, {transform_indices = @transform_1, window_bounds = array<i64: 2, 8, 128>}, {transform_indices = @transform_2, window_bounds = array<i64: 8, 128>}]} {
    %c0_i32 = arith.constant 0 : i32
    %0 = arith.cmpi eq, %arg1, %c0_i32 : i32
    %1 = arith.extui %0 : i1 to i32
    %c0_i32_0 = arith.constant 0 : i32
    %2 = arith.cmpi ne, %1, %c0_i32_0 : i32
    scf.if %2 {
      %cst_10 = arith.constant 0.000000e+00 : f32
      %12 = vector.broadcast %cst_10 : f32 to vector<8x128xf32>
      %c0_11 = arith.constant 0 : index
      %c0_12 = arith.constant 0 : index
      %13 = vector.load %arg4[%c0_11, %c0_12] : memref<8x128xf32, #tpu.memory_space<vmem>>, vector<8x128xf32>
      tpu.vector_store %arg4[%c0_11, %c0_12], %12 {strides = array<i32>} : memref<8x128xf32, #tpu.memory_space<vmem>>, vector<8x128xf32>,
    } else {
    }
    %c0 = arith.constant 0 : index
    %c0_1 = arith.constant 0 : index
    %c0_2 = arith.constant 0 : index
    %3 = vector.load %arg2[%c0, %c0_1, %c0_2] : memref<2x8x128xf32, #tpu.memory_space<vmem>>, vector<2x8x128xf32>
    %c0_3 = arith.constant 0 : index
    %c0_4 = arith.constant 0 : index
    %c0_5 = arith.constant 0 : index
    %4 = vector.load %arg3[%c0_3, %c0_4, %c0_5] : memref<2x8x128xf32, #tpu.memory_space<vmem>>, vector<2x8x128xf32>
    %5 = arith.subf %3, %4 : vector<2x8x128xf32>
    %6 = arith.mulf %5, %5 : vector<2x8x128xf32>
    %7 = arith.mulf %6, %6 : vector<2x8x128xf32>
    %c0_6 = arith.constant 0 : index
    %c0_7 = arith.constant 0 : index
    %8 = vector.load %arg4[%c0_6, %c0_7] : memref<8x128xf32, #tpu.memory_space<vmem>>, vector<8x128xf32>
    %cst = arith.constant dense<0.000000e+00> : vector<8x128xf32>
    %9 = vector.multi_reduction <add>, %7, %cst [0] : vector<2x8x128xf32> to vector<8x128xf32>
    %10 = arith.addf %8, %9 : vector<8x128xf32>
    %c0_8 = arith.constant 0 : index
    %c0_9 = arith.constant 0 : index
    %11 = vector.load %arg4[%c0_8, %c0_9] : memref<8x128xf32, #tpu.memory_space<vmem>>, vector<8x128xf32>
    tpu.vector_store %arg4[%c0_8, %c0_9], %10 {strides = array<i32>} : memref<8x128xf32, #tpu.memory_space<vmem>>, vector<8x128xf32>,
    return
  }
  func.func @transform_0(%arg0: i32, %arg1: i32) -> (i32, i32, i32) {
    %c1_i32 = arith.constant 1 : i32
    %0 = arith.muli %arg0, %c1_i32 : i32
    %1 = arith.addi %0, %arg1 : i32
    %c0_i32 = arith.constant 0 : i32
    %c0_i32_0 = arith.constant 0 : i32
    %c0_i32_1 = arith.constant 0 : i32
    return %1, %c0_i32, %c0_i32_0 : i32, i32, i32
  }
  func.func @transform_1(%arg0: i32, %arg1: i32) -> (i32, i32, i32) {
    %c1_i32 = arith.constant 1 : i32
    %0 = arith.muli %arg0, %c1_i32 : i32
    %1 = arith.addi %0, %arg1 : i32
    %c0_i32 = arith.constant 0 : i32
    %c0_i32_0 = arith.constant 0 : i32
    %c0_i32_1 = arith.constant 0 : i32
    return %1, %c0_i32, %c0_i32_0 : i32, i32, i32
  }
  func.func @transform_2(%arg0: i32, %arg1: i32) -> (i32, i32) {
    %c0_i32 = arith.constant 0 : i32
    %c0_i32_0 = arith.constant 0 : i32
    return %arg0, %c0_i32 : i32, i32
  }
}

</mosaic_0001>

<llo_original>
// kernel: tpu_custom_call.1
$region0: #{tpu_custom_call.1}
  #allocation0 [shape = 'u32[]', space=smem, size = 0x4, offset = 0x4, fixed_abs, tag = 'smem constant byte address 0x4 - core index']
  #allocation1 [shape = 'u32[144,128]{1,0:T(1,128)}', space=vmem, size = 0x12000, scoped, tag = 'internal scratch']
  %s0 = inlined_call_operand.hbm [shape: f32[2,8,128], index: 0, kind: input, shape index: {}]
  %s1 = inlined_call_operand.hbm [shape: f32[2,8,128], index: 1, kind: input, shape index: {}]
  %s2 = inlined_call_operand.hbm [shape: f32[8,128], index: 2, kind: output, shape index: {}]
  %s3 = sld [smem:[#allocation0]]
  $region30: #{tpu_custom_call.1} parent=0
    _
  %s5 = ssub.s32 1, %s3
  %s6 = scalar_select 0, %s5, %s3
  $region1: #{tpu_custom_call.1} parent=0
    #allocation2 [shape = 'u8[8192]{0}', space=vmem, size = 0x2000, scoped, tag = 'input window, operand 0, single buffered']
    #allocation3 [shape = 's32[1]{0}', space=sflag, size = 0x4, scoped, tag = 'scoped memory for tpu_custom_call.1']
    #allocation4 [shape = 's32[1]{0}', space=sflag, size = 0x4, scoped, tag = 'scoped memory for tpu_custom_call.1']
    #allocation5 [shape = 'u8[8192]{0}', space=vmem, size = 0x2000, scoped, tag = 'input window, operand 1, single buffered']
    #allocation6 [shape = 's32[1]{0}', space=sflag, size = 0x4, scoped, tag = 'scoped memory for tpu_custom_call.1']
    #allocation7 [shape = 'u8[4096]{0}', space=vmem, size = 0x1000, scoped, tag = 'output window, operand 0, single buffered']
    %7 = vsyncpa [#allocation3], 0
    %8 = vsyncpa [#allocation6], 0
    %9 = vsyncpa [#allocation4], 0
    // Predicated region
    $region2: #{tpu_custom_call.1} parent=1 // pred_check
      _
    $region3: #{tpu_custom_call.1} parent=1 // pred_check_branch
      %11 = sbr.rel (0) target = $region5
    $region4: #{tpu_custom_call.1} parent=1 // pred_region
      %s12 = sadd.s32 0, 0
      %s13 = smul.u32 2, %s12
      %s15 = ssub.s32 256, 256
      %16 = vsyncadd [#allocation3], %s15
      %s17 = smul.addr %s13, 128
      %s18 = scalar_lea.hbm %s0, %s17
      %s19 = sshll.u32 [#allocation2], 4
      %s20 = int_to_ptr.vmem [resolvable:$true] %s19
      %25 = dma.hbm_to_vmem [thread:$0]  %s18, 256, %s20, [#allocation3], 128, 128, 8
    $region5: #{tpu_custom_call.1} parent=1 // pred_fallthru
      _
    // Predicated region
    $region6: #{tpu_custom_call.1} parent=1 // pred_check
      _
    $region7: #{tpu_custom_call.1} parent=1 // pred_check_branch
      %27 = sbr.rel (0) target = $region9
    $region8: #{tpu_custom_call.1} parent=1 // pred_region
      %s28 = sadd.s32 0, 0
      %s29 = smul.u32 2, %s28
      %s31 = ssub.s32 256, 256
      %32 = vsyncadd [#allocation6], %s31
      %s33 = smul.addr %s29, 128
      %s34 = scalar_lea.hbm %s1, %s33
      %s35 = sshll.u32 [#allocation5], 4
      %s36 = int_to_ptr.vmem [resolvable:$true] %s35
      %41 = dma.hbm_to_vmem [thread:$0]  %s34, 256, %s36, [#allocation6], 128, 128, 8
    $region9: #{tpu_custom_call.1} parent=1 // pred_fallthru
      _
    // Predicated region
    $region10: #{tpu_custom_call.1} parent=1 // pred_check
      _
    $region11: #{tpu_custom_call.1} parent=1 // pred_check_branch
      %43 = sbr.rel (0) target = $region13
    $region12: #{tpu_custom_call.1} parent=1 // pred_region
      %44 = dma.done [#allocation3], 256
    $region13: #{tpu_custom_call.1} parent=1 // pred_fallthru
      _
    // Predicated region
    $region14: #{tpu_custom_call.1} parent=1 // pred_check
      _
    $region15: #{tpu_custom_call.1} parent=1 // pred_check_branch
      %46 = sbr.rel (0) target = $region17
    $region16: #{tpu_custom_call.1} parent=1 // pred_region
      %47 = dma.done [#allocation6], 256
    $region17: #{tpu_custom_call.1} parent=1 // pred_fallthru
      _
    %s48 = sadd.s32 0, 0
    %s49 = smul.u32 2, %s48
    %s50 = sadd.s32 0, 0
    %s51 = smul.u32 2, %s50
    %p52 = scmp.eq.s32.totalorder 0, 0
    // Predicated region
    $region18: #{tpu_custom_call.1} parent=1 // pred_check
      %p53 = pneg %p52
    $region19: #{tpu_custom_call.1} parent=1 // pred_check_branch
      %55 = sbr.rel (%p53) target = $region21
    $region20: #{tpu_custom_call.1} parent=1 // pred_region
      %56 = vst [vmem:[#allocation7] sm:$0xff] 0.0
    $region21: #{tpu_custom_call.1} parent=1 // pred_fallthru
      _
    %v57 = vld [vmem:[#allocation2] sm:$0xff]
    %v58 = vld [vmem:[#allocation2 + $0x8] sm:$0xff]
    %v59 = vld [vmem:[#allocation5] sm:$0xff]
    %v60 = vld [vmem:[#allocation5 + $0x8] sm:$0xff]
    %v61 = vsub.f32 %v57, %v59
    %v62 = vsub.f32 %v58, %v60
    %v63 = vmul.f32 %v61, %v61
    %v64 = vmul.f32 %v62, %v62
    %v65 = vmul.f32 %v63, %v63
    %v66 = vmul.f32 %v64, %v64
    %v67 = vld [vmem:[#allocation7] sm:$0xff]
    %v68 = vadd.f32 %v65, %v66
    %v69 = vadd.f32 %v67, %v68
    %70 = vst [vmem:[#allocation7] sm:$0xff] %v69
    // Predicated region
    $region22: #{tpu_custom_call.1} parent=1 // pred_check
      _
    $region23: #{tpu_custom_call.1} parent=1 // pred_check_branch
      %72 = sbr.rel (0) target = $region25
    $region24: #{tpu_custom_call.1} parent=1 // pred_region
      %s74 = ssub.s32 128, 128
      %75 = vsyncadd [#allocation4], %s74
      %s77 = sshll.u32 [#allocation7], 4
      %s78 = int_to_ptr.vmem [resolvable:$true] %s77
      %80 = dma.vmem_to_hbm [thread:$0]  %s78, 128, %s2, [#allocation4]
    $region25: #{tpu_custom_call.1} parent=1 // pred_fallthru
      _
    // Predicated region
    $region26: #{tpu_custom_call.1} parent=1 // pred_check
      _
    $region27: #{tpu_custom_call.1} parent=1 // pred_check_branch
      %82 = sbr.rel (0) target = $region29
    $region28: #{tpu_custom_call.1} parent=1 // pred_region
      %83 = dma.done [#allocation4], 128
    $region29: #{tpu_custom_call.1} parent=1 // pred_fallthru
      _
    %84 = vsyncpa [#allocation3], 1
    %85 = vsyncpa [#allocation6], 1
    %86 = vsyncpa [#allocation4], 1

</llo_original>
